<compile_context>
chip_gen: v7x
topology: tpu7x:2x2x1
jax: 0.10.0
libtpu: 0.0.40
codegen_flags: <defaults>
</compile_context>

<pallas_src>
import jax
import jax.numpy as jnp
from jax.experimental import pallas as pl
from jax.experimental.pallas import tpu as pltpu

# CartPole-like problem sizes (state_number=4, action_number=2).
STATE_NUMBER = 4
ACTION_NUMBER = 2
HIDDEN1 = 20
HIDDEN2 = 10
BATCH = 256          # demo batch of states per call (2 lane tiles)

LANE = 128           # TPU lane width


def _align8(n):
    return ((n + 7) // 8) * 8


# Row offsets inside the packed [P_ROWS, 128] parameter slab.
# Each layer block starts on an 8-row (sublane) boundary; weights live in
# cols [0:fan_in], the bias in the single column right after them.  Unused
# rows/cols are zero so nothing can leak into the matmuls.
_L1_ROW = 0
_L2_ROW = _align8(_L1_ROW + HIDDEN1)          # 24
_L3_ROW = _align8(_L2_ROW + HIDDEN2)          # 40
P_ROWS = _align8(_L3_ROW + ACTION_NUMBER)     # 48


def _mlp_kernel(xT_ref, p_ref, oT_ref):
    # xT_ref: [STATE_NUMBER, LANE]   (batch tile on the lane axis)
    # p_ref : [P_ROWS, 128] packed parameter slab (same block every grid step)
    # oT_ref: [ACTION_NUMBER, LANE]
    xT = xT_ref[...]

    w1 = p_ref[_L1_ROW:_L1_ROW + HIDDEN1, 0:STATE_NUMBER]                    # [20, 4]
    b1 = p_ref[_L1_ROW:_L1_ROW + HIDDEN1, STATE_NUMBER:STATE_NUMBER + 1]     # [20, 1]
    w2 = p_ref[_L2_ROW:_L2_ROW + HIDDEN2, 0:HIDDEN1]                         # [10, 20]
    b2 = p_ref[_L2_ROW:_L2_ROW + HIDDEN2, HIDDEN1:HIDDEN1 + 1]               # [10, 1]
    w3 = p_ref[_L3_ROW:_L3_ROW + ACTION_NUMBER, 0:HIDDEN2]                   # [A, 10]
    b3 = p_ref[_L3_ROW:_L3_ROW + ACTION_NUMBER, HIDDEN2:HIDDEN2 + 1]         # [A, 1]

    # Layer 1: Linear + ReLU      (feature-major: W @ X)
    h1 = jnp.dot(w1, xT, preferred_element_type=jnp.float32) + b1
    h1 = jnp.maximum(h1, 0.0)

    # Layer 2: Linear + sigmoid (exact, keeps 1e-5 agreement with reference)
    z2 = jnp.dot(w2, h1, preferred_element_type=jnp.float32) + b2
    h2 = 1.0 / (1.0 + jnp.exp(-z2))

    # Output layer: Linear
    logits = jnp.dot(w3, h2, preferred_element_type=jnp.float32) + b3        # [A, Bt]

    if ACTION_NUMBER == 2:
        # Exact 2-class softmax via the sigmoid identity: no cross-sublane
        # max/sum reductions, no divide on the critical path.
        p0 = 1.0 / (1.0 + jnp.exp(logits[1:2, :] - logits[0:1, :]))
        oT_ref[...] = jnp.concatenate([p0, 1.0 - p0], axis=0)
    else:
        # Generic numerically-stable softmax over the action (sublane) axis.
        m = jnp.max(logits, axis=0, keepdims=True)
        e = jnp.exp(logits - m)
        oT_ref[...] = e * (1.0 / jnp.sum(e, axis=0, keepdims=True))


@jax.jit
def net_forward(x, packed_params):
    """x: [batch, state_number] f32 -> action probabilities [batch, action_number]."""
    batch = x.shape[0]
    padded = ((batch + LANE - 1) // LANE) * LANE   # lane-align the batch

    # Layout plumbing in the wrapper: present a feature-major, lane-dense slab.
    xT = x.T                                        # [state_number, batch]
    if padded != batch:
        xT = jnp.pad(xT, ((0, 0), (0, padded - batch)))

    grid = (padded // LANE,)

    outT = pl.pallas_call(
        _mlp_kernel,
        out_shape=jax.ShapeDtypeStruct((ACTION_NUMBER, padded), jnp.float32),
        grid_spec=pltpu.PrefetchScalarGridSpec(
            num_scalar_prefetch=0,
            grid=grid,
            in_specs=[
                pl.BlockSpec((STATE_NUMBER, LANE), lambda i: (0, i)),  # batch tile
                pl.BlockSpec((P_ROWS, LANE), lambda i: (0, 0)),        # params (resident)
            ],
            out_specs=pl.BlockSpec((ACTION_NUMBER, LANE), lambda i: (0, i)),
        ),
        compiler_params=pltpu.CompilerParams(
            dimension_semantics=("parallel",)),  # shards batch tiles over TCs on v7x
    )(xT, packed_params)
    return outT[:, :batch].T


def init_params(key):
    """Mirror the PyTorch module: W ~ Normal(0, 0.1) with PyTorch's [out, in]
    layout; biases use the nn.Linear default uniform(-1/sqrt(fan_in), ...)."""
    k = jax.random.split(key, 6)

    def linear(kw, kb, fan_in, fan_out):
        w = 0.1 * jax.random.normal(kw, (fan_out, fan_in), dtype=jnp.float32)
        bound = fan_in ** -0.5
        b = jax.random.uniform(kb, (fan_out,), dtype=jnp.float32,
                               minval=-bound, maxval=bound)
        return w, b

    w1, b1 = linear(k[0], k[1], STATE_NUMBER, HIDDEN1)
    w2, b2 = linear(k[2], k[3], HIDDEN1, HIDDEN2)
    w3, b3 = linear(k[4], k[5], HIDDEN2, ACTION_NUMBER)
    return (w1, b1, w2, b2, w3, b3)


def pack_params(params):
    """Pack (w1,b1,w2,b2,w3,b3) into one zero-padded [P_ROWS, 128] f32 slab
    so the kernel needs a single parameter DMA."""
    w1, b1, w2, b2, w3, b3 = params
    slab = jnp.zeros((P_ROWS, LANE), dtype=jnp.float32)
    slab = slab.at[_L1_ROW:_L1_ROW + HIDDEN1, 0:STATE_NUMBER].set(w1)
    slab = slab.at[_L1_ROW:_L1_ROW + HIDDEN1, STATE_NUMBER].set(b1)
    slab = slab.at[_L2_ROW:_L2_ROW + HIDDEN2, 0:HIDDEN1].set(w2)
    slab = slab.at[_L2_ROW:_L2_ROW + HIDDEN2, HIDDEN1].set(b2)
    slab = slab.at[_L3_ROW:_L3_ROW + ACTION_NUMBER, 0:HIDDEN2].set(w3)
    slab = slab.at[_L3_ROW:_L3_ROW + ACTION_NUMBER, HIDDEN2].set(b3)
    return slab


def _reference(x, params):
    w1, b1, w2, b2, w3, b3 = params
    h1 = jnp.maximum(x @ w1.T + b1, 0.0)
    h2 = jax.nn.sigmoid(h1 @ w2.T + b2)
    return jax.nn.softmax(h2 @ w3.T + b3, axis=-1)


if __name__ == "__main__":
    key = jax.random.PRNGKey(0)
    kp, kx, kx2 = jax.random.split(key, 3)
    params = init_params(kp)
    packed = pack_params(params)

    # Main check: lane-aligned batch (2 full 128-wide tiles).
    x = jax.random.normal(kx, (BATCH, STATE_NUMBER), dtype=jnp.float32)
    out = jax.block_until_ready(net_forward(x, packed))
    ref = _reference(x, params)
    assert out.shape == (BATCH, ACTION_NUMBER)
    assert bool(jnp.allclose(jnp.sum(out, axis=-1), 1.0, atol=1e-5))
    assert bool(jnp.allclose(out, ref, atol=1e-5, rtol=1e-5))

    # Ragged-batch check: wrapper pads to a lane multiple, kernel stays
    # full-width, pad is sliced off afterwards.
    x_small = jax.random.normal(kx2, (50, STATE_NUMBER), dtype=jnp.float32)
    out_small = jax.block_until_ready(net_forward(x_small, packed))
    ref_small = _reference(x_small, params)
    assert out_small.shape == (50, ACTION_NUMBER)
    assert bool(jnp.allclose(out_small, ref_small, atol=1e-5, rtol=1e-5))

    # TODO(synk): action sampling (torch.distributions.Categorical) lives in the
    # RL loop, not in Net.forward, so it is not fused into this kernel.
    print("KERNEL_OK")
</pallas_src>

<mosaic_0001>
module attributes {stable_mosaic.version = 11 : i64} {
  func.func @_mlp_kernel(%arg0: i32, %arg1: memref<4x128xf32, #tpu.memory_space<vmem>>, %arg2: memref<48x128xf32, #tpu.memory_space<vmem>>, %arg3: memref<2x128xf32, #tpu.memory_space<vmem>>) attributes {dimension_semantics = [#tpu.dimension_semantics<parallel>], iteration_bounds = array<i64: 2>, scalar_prefetch = 0 : i64, scratch_operands = 0 : i64, tpu.core_type = #tpu.core_type<tc>, window_params = [{transform_indices = @transform_0, window_bounds = array<i64: 4, 128>}, {pipeline_mode = #tpu.pipeline_mode<synchronous>, transform_indices = @transform_1, window_bounds = array<i64: 48, 128>}, {transform_indices = @transform_2, window_bounds = array<i64: 2, 128>}]} {
    %c0 = arith.constant 0 : index
    %c0_0 = arith.constant 0 : index
    %0 = vector.load %arg1[%c0, %c0_0] : memref<4x128xf32, #tpu.memory_space<vmem>>, vector<4x128xf32>
    %c0_1 = arith.constant 0 : index
    %c0_2 = arith.constant 0 : index
    %1 = vector.load %arg2[%c0_1, %c0_2] : memref<48x128xf32, #tpu.memory_space<vmem>>, vector<20x4xf32>
    %c0_3 = arith.constant 0 : index
    %c4 = arith.constant 4 : index
    %2 = vector.load %arg2[%c0_3, %c4] : memref<48x128xf32, #tpu.memory_space<vmem>>, vector<20x1xf32>
    %c24 = arith.constant 24 : index
    %c0_4 = arith.constant 0 : index
    %3 = vector.load %arg2[%c24, %c0_4] : memref<48x128xf32, #tpu.memory_space<vmem>>, vector<10x20xf32>
    %c24_5 = arith.constant 24 : index
    %c20 = arith.constant 20 : index
    %4 = vector.load %arg2[%c24_5, %c20] : memref<48x128xf32, #tpu.memory_space<vmem>>, vector<10x1xf32>
    %c40 = arith.constant 40 : index
    %c0_6 = arith.constant 0 : index
    %5 = vector.load %arg2[%c40, %c0_6] : memref<48x128xf32, #tpu.memory_space<vmem>>, vector<2x10xf32>
    %c40_7 = arith.constant 40 : index
    %c10 = arith.constant 10 : index
    %6 = vector.load %arg2[%c40_7, %c10] : memref<48x128xf32, #tpu.memory_space<vmem>>, vector<2x1xf32>
    %cst = arith.constant dense<0.000000e+00> : vector<20x128xf32>
    %7 = tpu.matmul %1, %0, %cst {dimension_numbers = #tpu.dot_dimension_numbers<[1], [0], [0], [1], [0, 0, 1, 1], [], []>} : vector<20x4xf32>, vector<4x128xf32>, vector<20x128xf32> -> vector<20x128xf32>
    %8 = vector.broadcast %2 : vector<20x1xf32> to vector<20x128xf32>
    %9 = arith.addf %7, %8 : vector<20x128xf32>
    %cst_8 = arith.constant 0.000000e+00 : f32
    %10 = vector.broadcast %cst_8 : f32 to vector<20x128xf32>
    %11 = arith.maximumf %9, %10 : vector<20x128xf32>
    %cst_9 = arith.constant dense<0.000000e+00> : vector<10x128xf32>
    %12 = tpu.matmul %3, %11, %cst_9 {dimension_numbers = #tpu.dot_dimension_numbers<[1], [0], [0], [1], [0, 0, 1, 1], [], []>} : vector<10x20xf32>, vector<20x128xf32>, vector<10x128xf32> -> vector<10x128xf32>
    %13 = vector.broadcast %4 : vector<10x1xf32> to vector<10x128xf32>
    %14 = arith.addf %12, %13 : vector<10x128xf32>
    %cst_10 = arith.constant 0.000000e+00 : f32
    %15 = vector.broadcast %cst_10 : f32 to vector<10x128xf32>
    %16 = arith.subf %15, %14 : vector<10x128xf32>
    %17 = math.exp %16 : vector<10x128xf32>
    %cst_11 = arith.constant 1.000000e+00 : f32
    %18 = vector.broadcast %cst_11 : f32 to vector<10x128xf32>
    %19 = arith.addf %18, %17 : vector<10x128xf32>
    %cst_12 = arith.constant 1.000000e+00 : f32
    %20 = vector.broadcast %cst_12 : f32 to vector<10x128xf32>
    %21 = arith.divf %20, %19 : vector<10x128xf32>
    %cst_13 = arith.constant dense<0.000000e+00> : vector<2x128xf32>
    %22 = tpu.matmul %5, %21, %cst_13 {dimension_numbers = #tpu.dot_dimension_numbers<[1], [0], [0], [1], [0, 0, 1, 1], [], []>} : vector<2x10xf32>, vector<10x128xf32>, vector<2x128xf32> -> vector<2x128xf32>
    %23 = vector.broadcast %6 : vector<2x1xf32> to vector<2x128xf32>
    %24 = arith.addf %22, %23 : vector<2x128xf32>
    %25 = vector.extract_strided_slice %24 {offsets = [1, 0], sizes = [1, 128], strides = [1, 1]} : vector<2x128xf32> to vector<1x128xf32>
    %26 = vector.extract_strided_slice %24 {offsets = [0, 0], sizes = [1, 128], strides = [1, 1]} : vector<2x128xf32> to vector<1x128xf32>
    %27 = arith.subf %25, %26 : vector<1x128xf32>
    %28 = math.exp %27 : vector<1x128xf32>
    %cst_14 = arith.constant 1.000000e+00 : f32
    %29 = vector.broadcast %cst_14 : f32 to vector<1x128xf32>
    %30 = arith.addf %29, %28 : vector<1x128xf32>
    %cst_15 = arith.constant 1.000000e+00 : f32
    %31 = vector.broadcast %cst_15 : f32 to vector<1x128xf32>
    %32 = arith.divf %31, %30 : vector<1x128xf32>
    %cst_16 = arith.constant 1.000000e+00 : f32
    %33 = vector.broadcast %cst_16 : f32 to vector<1x128xf32>
    %34 = arith.subf %33, %32 : vector<1x128xf32>
    %35 = tpu.concatenate %32, %34 in 0 : vector<1x128xf32>, vector<1x128xf32> -> vector<2x128xf32>
    %c0_17 = arith.constant 0 : index
    %c0_18 = arith.constant 0 : index
    %36 = vector.load %arg3[%c0_17, %c0_18] : memref<2x128xf32, #tpu.memory_space<vmem>>, vector<2x128xf32>
    tpu.vector_store %arg3[%c0_17, %c0_18], %35 {strides = array<i32>} : memref<2x128xf32, #tpu.memory_space<vmem>>, vector<2x128xf32>,
    return
  }
  func.func @transform_0(%arg0: i32) -> (i32, i32) {
    %c0_i32 = arith.constant 0 : i32
    %c0_i32_0 = arith.constant 0 : i32
    return %c0_i32, %arg0 : i32, i32
  }
  func.func @transform_1(%arg0: i32) -> (i32, i32) {
    %c0_i32 = arith.constant 0 : i32
    %c0_i32_0 = arith.constant 0 : i32
    %c0_i32_1 = arith.constant 0 : i32
    return %c0_i32, %c0_i32_0 : i32, i32
  }
  func.func @transform_2(%arg0: i32) -> (i32, i32) {
    %c0_i32 = arith.constant 0 : i32
    %c0_i32_0 = arith.constant 0 : i32
    return %c0_i32, %arg0 : i32, i32
  }
}

</mosaic_0001>

<llo_original>
// kernel: net_forward.1
$region0: #{net_forward.1}
  #allocation0 [shape = 'u32[]', space=smem, size = 0x4, offset = 0x4, fixed_abs, tag = 'smem constant byte address 0x4 - core index']
  #allocation1 [shape = 'u32[144,128]{1,0:T(1,128)}', space=vmem, size = 0x12000, scoped, tag = 'internal scratch']
  %s0 = inlined_call_operand.hbm [shape: f32[4,256], index: 0, kind: input, shape index: {}]
  %s1 = inlined_call_operand.hbm [shape: f32[48,128], index: 1, kind: input, shape index: {}]
  %s2 = inlined_call_operand.hbm [shape: f32[2,256], index: 2, kind: output, shape index: {}]
  %s3 = sld [smem:[#allocation0]]
  $region49: #{net_forward.1} parent=0
    _
  %s5 = ssub.s32 1, %s3
  %s6 = scalar_select 0, %s5, %s3
  $region1: #{net_forward.1} parent=0
    #allocation2 [shape = 'u8[4096]{0}', space=vmem, size = 0x1000, scoped, tag = 'input window, operand 0']
    #allocation3 [shape = 's32[2]{0}', space=sflag, size = 0x8, scoped, tag = 'scoped memory for net_forward.1']
    #allocation4 [shape = 's32[2]{0}', space=sflag, size = 0x8, scoped, tag = 'scoped memory for net_forward.1']
    #allocation5 [shape = 'u8[24576]{0}', space=vmem, size = 0x6000, scoped, tag = 'input window, operand 1, single buffered']
    #allocation6 [shape = 's32[1]{0}', space=sflag, size = 0x4, scoped, tag = 'scoped memory for net_forward.1']
    #allocation7 [shape = 'u8[2048]{0}', space=vmem, size = 0x800, scoped, tag = 'output window, operand 0']
    %7 = vsyncpa [#allocation3], 0
    %s8 = scalar_lea.sflag [#allocation3], 1
    %9 = vsyncpa %s8, 0
    %10 = vsyncpa [#allocation6], 0
    %11 = vsyncpa [#allocation4], 0
    %s12 = scalar_lea.sflag [#allocation4], 1
    %13 = vsyncpa %s12, 0
    loop: start=0, step=1, limit=4
    $region2: #{net_forward.1} parent=1 // loop_pre_header
      _
    $region3: #{net_forward.1} parent=1 // loop_header
      %s15 = sphi 0, %s19
      %p16 = scmp.ge.s32.totalorder %s15, 4
      %s25 = sphi 0, %s27
      %s28 = sphi 0, %s25
      %s29 = sphi 0, %s28
      %s45 = sphi 0, %s29
      %s49 = sphi 0, %s49
      %s51 = sphi 0, %s49
      %s52 = sphi 0, %s51
      %s66 = sphi 0, %s52
      %s72 = sphi 0, %s74
      %s75 = sphi 0, %s72
      %s76 = sphi 0, %s75
      %s92 = sphi 0, %s76
    $region4: #{net_forward.1} parent=1 // loop_header_branch
      %18 = sbr.rel (%p16) target = $region8
    $region5: #{net_forward.1} parent=1 // loop_body
      %s20 = ssub.s32 %s15, 1
      %s21 = ssub.s32 %s15, 2
      %s22 = sadd.s32 %s15, 1
      %s23 = ssub.s32 %s15, %s22
      %p24 = scmp.eq.s32.totalorder %s23, 0
      %s26 = sadd.s32 %s25, 1
      %s27 = scalar_select %p24, %s25, %s26
      %p30 = pneg %p24
      %p31 = scmp.eq.s32.totalorder %s15, 1
      %p32 = por %p30, %p31
      %p33 = scmp.ne.s32.totalorder %s25, %s28
      %p34 = scmp.eq.s32.totalorder %s15, 0
      %p35 = por %p33, %p34
      %p36 = scmp.ne.s32.totalorder %s25, %s28
      %p37 = scmp.eq.s32.totalorder %s20, 1
      %p38 = por %p36, %p37
      %p39 = scmp.ne.s32.totalorder %s28, %s29
      %p40 = scmp.eq.s32.totalorder %s20, 0
      %p41 = por %p39, %p40
      %p42 = scmp.ne.s32.totalorder %s28, %s29
      %p43 = scmp.eq.s32.totalorder %s21, 1
      %p44 = por %p42, %p43
      %p46 = scmp.ne.s32.totalorder %s29, %s45
      %p47 = scmp.eq.s32.totalorder %s21, 0
      %p48 = por %p46, %p47
      %s50 = sadd.s32 %s49, 1
      %p53 = scmp.eq.s32.totalorder %s15, 1
      %p54 = scmp.ne.s32.totalorder %s49, %s51
      %p55 = scmp.eq.s32.totalorder %s15, 0
      %p56 = por %p54, %p55
      %p57 = scmp.ne.s32.totalorder %s49, %s51
      %p58 = scmp.eq.s32.totalorder %s20, 1
      %p59 = por %p57, %p58
      %p60 = scmp.ne.s32.totalorder %s51, %s52
      %p61 = scmp.eq.s32.totalorder %s20, 0
      %p62 = por %p60, %p61
      %p63 = scmp.ne.s32.totalorder %s51, %s52
      %p64 = scmp.eq.s32.totalorder %s21, 1
      %p65 = por %p63, %p64
      %p67 = scmp.ne.s32.totalorder %s52, %s66
      %p68 = scmp.eq.s32.totalorder %s21, 0
      %p69 = por %p67, %p68
      %s70 = ssub.s32 %s15, %s22
      %p71 = scmp.eq.s32.totalorder %s70, 0
      %s73 = sadd.s32 %s72, 1
      %s74 = scalar_select %p71, %s72, %s73
      %p77 = pneg %p71
      %p78 = scmp.eq.s32.totalorder %s15, 1
      %p79 = por %p77, %p78
      %p80 = scmp.ne.s32.totalorder %s72, %s75
      %p81 = scmp.eq.s32.totalorder %s15, 0
      %p82 = por %p80, %p81
      %p83 = scmp.ne.s32.totalorder %s72, %s75
      %p84 = scmp.eq.s32.totalorder %s20, 1
      %p85 = por %p83, %p84
      %p86 = scmp.ne.s32.totalorder %s75, %s76
      %p87 = scmp.eq.s32.totalorder %s20, 0
      %p88 = por %p86, %p87
      %p89 = scmp.ne.s32.totalorder %s75, %s76
      %p90 = scmp.eq.s32.totalorder %s21, 1
      %p91 = por %p89, %p90
      %p93 = scmp.ne.s32.totalorder %s76, %s92
      %p94 = scmp.eq.s32.totalorder %s21, 0
      %p95 = por %p93, %p94
      %p96 = scmp.le.s32.totalorder 1, %s15
      %p97 = scmp.lt.s32.totalorder %s15, 3
      %p98 = pnand %p96, %p97
      %p99 = pneg %p98
      // Predicated region
      $region9: #{net_forward.1} parent=5 // pred_check
        _
      $region10: #{net_forward.1} parent=5 // pred_check_branch
        %101 = sbr.rel (%p98) target = $region12
      $region11: #{net_forward.1} parent=5 // pred_region
        %s102 = ssub.s32 %s15, 1
        // Predicated region
        $region13: #{net_forward.1} parent=11 // pred_check
          %p103 = pneg %p62
        $region14: #{net_forward.1} parent=11 // pred_check_branch
          %105 = sbr.rel (%p103) target = $region16
        $region15: #{net_forward.1} parent=11 // pred_region
          %s107 = ssub.s32 768, 768
          %108 = vsyncadd [#allocation6], %s107
          %s109 = sshll.u32 [#allocation5], 4
          %s110 = int_to_ptr.vmem [resolvable:$true] %s109
          %115 = dma.hbm_to_vmem [thread:$0]  %s1, 768, %s110, [#allocation6], 128, 128, 8
        $region16: #{net_forward.1} parent=11 // pred_fallthru
          _
      $region12: #{net_forward.1} parent=5 // pred_fallthru
        _
      %p116 = scmp.lt.s32.totalorder %s15, 2
      // Predicated region
      $region17: #{net_forward.1} parent=5 // pred_check
        %p117 = pneg %p116
      $region18: #{net_forward.1} parent=5 // pred_check_branch
        %119 = sbr.rel (%p117) target = $region20
      $region19: #{net_forward.1} parent=5 // pred_region
        // Predicated region
        $region21: #{net_forward.1} parent=19 // pred_check
          %p120 = pneg %p35
        $region22: #{net_forward.1} parent=19 // pred_check_branch
          %122 = sbr.rel (%p120) target = $region24
        $region23: #{net_forward.1} parent=19 // pred_region
          %s123 = sand.u32 %s25, 1
          %s124 = scalar_lea.sflag [#allocation3], %s123
          %s125 = sand.u32 %s25, 1
          %s126 = smul.addr %s125, 4
          %s127 = scalar_lea.vmem [#allocation2], %s126
          %s129 = ssub.s32 64, 64
          %130 = vsyncadd %s124, %s129
          %s131 = smul.addr %s15, 64
          %s132 = scalar_lea.hbm %s0, %s131
          %s134 = sshll.u32 %s127, 4
          %s135 = int_to_ptr.vmem [resolvable:$true] %s134
          %137 = dma.hbm_to_vmem [thread:$0]  %s132, 64, %s135, %s124
        $region24: #{net_forward.1} parent=19 // pred_fallthru
          _
      $region20: #{net_forward.1} parent=5 // pred_fallthru
        _
      %p138 = scmp.le.s32.totalorder 1, %s15
      %p139 = scmp.lt.s32.totalorder %s15, 3
      %p140 = pnand %p138, %p139
      %p141 = pneg %p140
      // Predicated region
      $region25: #{net_forward.1} parent=5 // pred_check
        _
      $region26: #{net_forward.1} parent=5 // pred_check_branch
        %143 = sbr.rel (%p140) target = $region28
      $region27: #{net_forward.1} parent=5 // pred_region
        %s144 = ssub.s32 %s15, 1
        %s145 = sand.u32 %s28, 1
        %s146 = scalar_lea.sflag [#allocation3], %s145
        %s147 = sand.u32 %s28, 1
        %s148 = smul.addr %s147, 4
        %s149 = scalar_lea.vmem [#allocation2], %s148
        // Predicated region
        $region29: #{net_forward.1} parent=27 // pred_check
          %p150 = pneg %p41
        $region30: #{net_forward.1} parent=27 // pred_check_branch
          %152 = sbr.rel (%p150) target = $region32
        $region31: #{net_forward.1} parent=27 // pred_region
          %153 = dma.done %s146, 64
        $region32: #{net_forward.1} parent=27 // pred_fallthru
          _
        // Predicated region
        $region33: #{net_forward.1} parent=27 // pred_check
          %p154 = pneg %p62
        $region34: #{net_forward.1} parent=27 // pred_check_branch
          %156 = sbr.rel (%p154) target = $region36
        $region35: #{net_forward.1} parent=27 // pred_region
          %157 = dma.done [#allocation6], 768
        $region36: #{net_forward.1} parent=27 // pred_fallthru
          _
        %s158 = sand.u32 %s28, 1
        %s159 = scalar_lea.sflag [#allocation3], %s158
        %s160 = sand.u32 %s28, 1
        %s161 = smul.addr %s160, 4
        %s162 = scalar_lea.vmem [#allocation2], %s161
        %p163 = pneg %p41
        %p164 = pneg %p38
        %p165 = pneg %p62
        %p166 = pneg %p59
        %p167 = pneg %p88
        %p168 = pneg %p85
        %s169 = sand.u32 %s75, 1
        %s170 = scalar_lea.sflag [#allocation4], %s169
        %s171 = sand.u32 %s75, 1
        %s172 = smul.addr %s171, 2
        %s173 = scalar_lea.vmem [#allocation7], %s172
        %v174 = vld [vmem:[%s149] sm:$0xf]
        %v175 = vld [vmem:[#allocation5] sm:$0xff]
        %v176 = vld [vmem:[#allocation5 + $0x8] sm:$0xff]
        %v177 = vld [vmem:[#allocation5 + $0x10] sm:$0xf]
        %v178 = vld [vmem:[#allocation5 + $0x18] sm:$0xff]
        %v179 = vld [vmem:[#allocation5 + $0x20] sm:$0x3]
        %v180 = vld [vmem:[#allocation5 + $0x28] sm:$0x3]
        %182 = vset.pattern.permute.xlu0 4
        %183 = vperm.xlu0 %182, %v175
        %v184 = vpop.permute.xlu0 %183
        %187 = vset.pattern.permute.xlu0 4
        %188 = vperm.xlu0 %187, %v176
        %v189 = vpop.permute.xlu0 %188
        %192 = vset.pattern.permute.xlu0 4
        %193 = vperm.xlu0 %192, %v177
        %v194 = vpop.permute.xlu0 %193
        %vm196 = vcmask 31744
        %v197 = vsel %vm196, %v175, 0
        %v199 = vsel %vm196, %v176, 0
        %v201 = vsel %vm196, %v177, 0
        %vm203 = vcmask 1043456
        %v205 = vsel %vm203, %v174, 0
        %207 = vmatprep.subr.mxu0 0.0
        %208 = vmatpush1.msra.mxu0 %v205
        %209 = vmatprep.subr.mxu0 0.0
        %210 = vmatpush1.msra.mxu0 0.0
        %211 = vmatprep.subr.mxu0 0.0
        %212 = vmatpush1.msra.mxu0 0.0
        %213 = vmatprep.subr.mxu0 0.0
        %214 = vmatpush1.msra.mxu0 0.0
        %215 = vmatprep.subr.mxu0 0.0
        %216 = vmatpush1.msra.mxu0 0.0
        %217 = vmatprep.subr.mxu0 0.0
        %218 = vmatpush1.msra.mxu0 0.0
        %219 = vmatprep.subr.mxu0 0.0
        %220 = vmatpush1.msra.mxu0 0.0
        %221 = vmatprep.subr.mxu0 0.0
        %222 = vmatpush1.msra.mxu0 0.0
        %223 = vmatprep.subr.mxu0 0.0
        %224 = vmatpush1.msra.mxu0 0.0
        %225 = vmatprep.subr.mxu0 0.0
        %226 = vmatpush1.msra.mxu0 0.0
        %227 = vmatprep.subr.mxu0 0.0
        %228 = vmatpush1.msra.mxu0 0.0
        %229 = vmatprep.subr.mxu0 0.0
        %230 = vmatpush1.msra.mxu0 0.0
        %231 = vmatprep.subr.mxu0 0.0
        %232 = vmatpush1.msra.mxu0 0.0
        %233 = vmatprep.subr.mxu0 0.0
        %234 = vmatpush1.msra.mxu0 0.0
        %235 = vmatprep.subr.mxu0 0.0
        %236 = vmatpush1.msra.mxu0 0.0
        %237 = vmatprep.subr.mxu0 0.0
        %238 = vmatpush1.msra.mxu0 0.0
        %239 = vmatprep.subr.mxu0 0.0
        %240 = vmatpush1.msra.mxu0 0.0
        %241 = vmatprep.subr.mxu0 0.0
        %242 = vmatpush1.msra.mxu0 0.0
        %243 = vmatprep.subr.mxu0 0.0
        %244 = vmatpush1.msra.mxu0 0.0
        %245 = vmatprep.subr.mxu0 0.0
        %246 = vmatpush1.msra.mxu0 0.0
        %247 = vmatprep.subr.mxu0 0.0
        %248 = vmatpush1.msra.mxu0 0.0
        %249 = vmatprep.subr.mxu0 0.0
        %250 = vmatpush1.msra.mxu0 0.0
        %251 = vmatprep.subr.mxu0 0.0
        %252 = vmatpush1.msra.mxu0 0.0
        %253 = vmatprep.subr.mxu0 0.0
        %254 = vmatpush1.msra.mxu0 0.0
        %255 = vmatprep.subr.mxu0 0.0
        %256 = vmatpush1.msra.mxu0 0.0
        %257 = vmatprep.subr.mxu0 0.0
        %258 = vmatpush1.msra.mxu0 0.0
        %259 = vmatprep.subr.mxu0 0.0
        %260 = vmatpush1.msra.mxu0 0.0
        %261 = vmatprep.subr.mxu0 0.0
        %262 = vmatpush1.msra.mxu0 0.0
        %263 = vmatprep.subr.mxu0 0.0
        %264 = vmatpush1.msra.mxu0 0.0
        %265 = vmatprep.subr.mxu0 0.0
        %266 = vmatpush1.msra.mxu0 0.0
        %267 = vmatprep.subr.mxu0 0.0
        %268 = vmatpush1.msra.mxu0 0.0
        %269 = vmatprep.subr.mxu0 0.0
        %270 = vmatpush1.msra.mxu0 0.0
        %271 = vmatprep.mubr.f32.mxu0 0.0
        %272 = vmatmul.mubr.f32.gmra.mrb[0].mxu0 %v197
        %v273 = vpop.f32.mrb[0].mxu0
        %v274 = vadd.f32 %v184, %v273
        %v275 = vpop.f32.mrb[0].mxu0
        %276 = vmatprep.mubr.f32.mxu0 0.0
        %277 = vmatmul.mubr.f32.gmra.mrb[0].mxu0 %v199
        %v278 = vpop.f32.mrb[0].mxu0
        %v279 = vadd.f32 %v189, %v278
        %v280 = vpop.f32.mrb[0].mxu0
        %281 = vmatprep.mubr.f32.mxu0 0.0
        %282 = vmatmul.mubr.f32.gmra.mrb[0].mxu0 %v201
        %v283 = vpop.f32.mrb[0].mxu0
        %v284 = vadd.f32 %v194, %v283
        %v285 = vpop.f32.mrb[0].mxu0
        %286 = vdwg.mxu0
        %v287 = vmax.f32 %v274, 0.0
        %v288 = vmax.f32 %v279, 0.0
        %v289 = vmax.f32 %v284, 0.0
        %291 = vset.pattern.permute.xlu0 20
        %292 = vperm.xlu0 %291, %v178
        %v293 = vpop.permute.xlu0 %292
        %296 = vset.pattern.permute.xlu0 20
        %297 = vperm.xlu0 %296, %v179
        %v298 = vpop.permute.xlu0 %297
        %vm300 = vcmask 162816
        %v301 = vsel %vm300, %v178, 0
        %v303 = vsel %vm300, %v179, 0
        %v306 = vsel %vm203, %v289, 0
        %308 = vmatprep.subr.mxu0 0.0
        %309 = vmatpush1.msra.mxu0 %v287
        %310 = vmatprep.subr.mxu0 0.0
        %311 = vmatpush1.msra.mxu0 %v288
        %312 = vmatprep.subr.mxu0 0.0
        %313 = vmatpush1.msra.mxu0 %v306
        %314 = vmatprep.subr.mxu0 0.0
        %315 = vmatpush1.msra.mxu0 0.0
        %316 = vmatprep.subr.mxu0 0.0
        %317 = vmatpush1.msra.mxu0 0.0
        %318 = vmatprep.subr.mxu0 0.0
        %319 = vmatpush1.msra.mxu0 0.0
        %320 = vmatprep.subr.mxu0 0.0
        %321 = vmatpush1.msra.mxu0 0.0
        %322 = vmatprep.subr.mxu0 0.0
        %323 = vmatpush1.msra.mxu0 0.0
        %324 = vmatprep.subr.mxu0 0.0
        %325 = vmatpush1.msra.mxu0 0.0
        %326 = vmatprep.subr.mxu0 0.0
        %327 = vmatpush1.msra.mxu0 0.0
        %328 = vmatprep.subr.mxu0 0.0
        %329 = vmatpush1.msra.mxu0 0.0
        %330 = vmatprep.subr.mxu0 0.0
        %331 = vmatpush1.msra.mxu0 0.0
        %332 = vmatprep.subr.mxu0 0.0
        %333 = vmatpush1.msra.mxu0 0.0
        %334 = vmatprep.subr.mxu0 0.0
        %335 = vmatpush1.msra.mxu0 0.0
        %336 = vmatprep.subr.mxu0 0.0
        %337 = vmatpush1.msra.mxu0 0.0
        %338 = vmatprep.subr.mxu0 0.0
        %339 = vmatpush1.msra.mxu0 0.0
        %340 = vmatprep.subr.mxu0 0.0
        %341 = vmatpush1.msra.mxu0 0.0
        %342 = vmatprep.subr.mxu0 0.0
        %343 = vmatpush1.msra.mxu0 0.0
        %344 = vmatprep.subr.mxu0 0.0
        %345 = vmatpush1.msra.mxu0 0.0
        %346 = vmatprep.subr.mxu0 0.0
        %347 = vmatpush1.msra.mxu0 0.0
        %348 = vmatprep.subr.mxu0 0.0
        %349 = vmatpush1.msra.mxu0 0.0
        %350 = vmatprep.subr.mxu0 0.0
        %351 = vmatpush1.msra.mxu0 0.0
        %352 = vmatprep.subr.mxu0 0.0
        %353 = vmatpush1.msra.mxu0 0.0
        %354 = vmatprep.subr.mxu0 0.0
        %355 = vmatpush1.msra.mxu0 0.0
        %356 = vmatprep.subr.mxu0 0.0
        %357 = vmatpush1.msra.mxu0 0.0
        %358 = vmatprep.subr.mxu0 0.0
        %359 = vmatpush1.msra.mxu0 0.0
        %360 = vmatprep.subr.mxu0 0.0
        %361 = vmatpush1.msra.mxu0 0.0
        %362 = vmatprep.subr.mxu0 0.0
        %363 = vmatpush1.msra.mxu0 0.0
        %364 = vmatprep.subr.mxu0 0.0
        %365 = vmatpush1.msra.mxu0 0.0
        %366 = vmatprep.subr.mxu0 0.0
        %367 = vmatpush1.msra.mxu0 0.0
        %368 = vmatprep.subr.mxu0 0.0
        %369 = vmatpush1.msra.mxu0 0.0
        %370 = vmatprep.subr.mxu0 0.0
        %371 = vmatpush1.msra.mxu0 0.0
        %372 = vmatprep.mubr.f32.mxu0 0.0
        %373 = vmatmul.mubr.f32.gmra.mrb[0].mxu0 %v301
        %v374 = vpop.f32.mrb[0].mxu0
        %v375 = vadd.f32 %v293, %v374
        %v376 = vpop.f32.mrb[0].mxu0
        %377 = vmatprep.mubr.f32.mxu0 0.0
        %378 = vmatmul.mubr.f32.gmra.mrb[0].mxu0 %v303
        %v379 = vpop.f32.mrb[0].mxu0
        %v380 = vadd.f32 %v298, %v379
        %v381 = vpop.f32.mrb[0].mxu0
        %382 = vdwg.mxu0
        %v383 = vsub.f32 0.0, %v375
        %v384 = vsub.f32 0.0, %v380
        %v385 = vmul.f32 %v383, 1.442695
        %v386 = vpow.pop %v385
        %v387 = vmul.f32 %v384, 1.442695
        %v388 = vpow.pop %v387
        %v389 = vadd.f32 %v386, 1.0
        %v390 = vadd.f32 %v388, 1.0
        %v391 = vrcp.pop %v389
        %v392 = vmul.f32 1.0, %v391
        %v393 = vrcp.pop %v390
        %v394 = vmul.f32 1.0, %v393
        %396 = vset.pattern.permute.xlu0 10
        %397 = vperm.xlu0 %396, %v180
        %v398 = vpop.permute.xlu0 %397
        %vm400 = vcmask 80896
        %v401 = vsel %vm400, %v180, 0
        %vm403 = vcmask 1041408
        %v405 = vsel %vm403, %v394, 0
        %407 = vmatprep.subr.mxu0 0.0
        %408 = vmatpush1.msra.mxu0 %v392
        %409 = vmatprep.subr.mxu0 0.0
        %410 = vmatpush1.msra.mxu0 %v405
        %411 = vmatprep.subr.mxu0 0.0
        %412 = vmatpush1.msra.mxu0 0.0
        %413 = vmatprep.subr.mxu0 0.0
        %414 = vmatpush1.msra.mxu0 0.0
        %415 = vmatprep.subr.mxu0 0.0
        %416 = vmatpush1.msra.mxu0 0.0
        %417 = vmatprep.subr.mxu0 0.0
        %418 = vmatpush1.msra.mxu0 0.0
        %419 = vmatprep.subr.mxu0 0.0
        %420 = vmatpush1.msra.mxu0 0.0
        %421 = vmatprep.subr.mxu0 0.0
        %422 = vmatpush1.msra.mxu0 0.0
        %423 = vmatprep.subr.mxu0 0.0
        %424 = vmatpush1.msra.mxu0 0.0
        %425 = vmatprep.subr.mxu0 0.0
        %426 = vmatpush1.msra.mxu0 0.0
        %427 = vmatprep.subr.mxu0 0.0
        %428 = vmatpush1.msra.mxu0 0.0
        %429 = vmatprep.subr.mxu0 0.0
        %430 = vmatpush1.msra.mxu0 0.0
        %431 = vmatprep.subr.mxu0 0.0
        %432 = vmatpush1.msra.mxu0 0.0
        %433 = vmatprep.subr.mxu0 0.0
        %434 = vmatpush1.msra.mxu0 0.0
        %435 = vmatprep.subr.mxu0 0.0
        %436 = vmatpush1.msra.mxu0 0.0
        %437 = vmatprep.subr.mxu0 0.0
        %438 = vmatpush1.msra.mxu0 0.0
        %439 = vmatprep.subr.mxu0 0.0
        %440 = vmatpush1.msra.mxu0 0.0
        %441 = vmatprep.subr.mxu0 0.0
        %442 = vmatpush1.msra.mxu0 0.0
        %443 = vmatprep.subr.mxu0 0.0
        %444 = vmatpush1.msra.mxu0 0.0
        %445 = vmatprep.subr.mxu0 0.0
        %446 = vmatpush1.msra.mxu0 0.0
        %447 = vmatprep.subr.mxu0 0.0
        %448 = vmatpush1.msra.mxu0 0.0
        %449 = vmatprep.subr.mxu0 0.0
        %450 = vmatpush1.msra.mxu0 0.0
        %451 = vmatprep.subr.mxu0 0.0
        %452 = vmatpush1.msra.mxu0 0.0
        %453 = vmatprep.subr.mxu0 0.0
        %454 = vmatpush1.msra.mxu0 0.0
        %455 = vmatprep.subr.mxu0 0.0
        %456 = vmatpush1.msra.mxu0 0.0
        %457 = vmatprep.subr.mxu0 0.0
        %458 = vmatpush1.msra.mxu0 0.0
        %459 = vmatprep.subr.mxu0 0.0
        %460 = vmatpush1.msra.mxu0 0.0
        %461 = vmatprep.subr.mxu0 0.0
        %462 = vmatpush1.msra.mxu0 0.0
        %463 = vmatprep.subr.mxu0 0.0
        %464 = vmatpush1.msra.mxu0 0.0
        %465 = vmatprep.subr.mxu0 0.0
        %466 = vmatpush1.msra.mxu0 0.0
        %467 = vmatprep.subr.mxu0 0.0
        %468 = vmatpush1.msra.mxu0 0.0
        %469 = vmatprep.subr.mxu0 0.0
        %470 = vmatpush1.msra.mxu0 0.0
        %471 = vmatprep.mubr.f32.mxu0 0.0
        %472 = vmatmul.mubr.f32.gmra.mrb[0].mxu0 %v401
        %v473 = vpop.f32.mrb[0].mxu0
        %v474 = vadd.f32 %v398, %v473
        %v475 = vpop.f32.mrb[0].mxu0
        %476 = vdwg.mxu0
        %v478 = vrot.slane %v474, 7
        %v480 = vsub.f32 %v474, %v478
        %v481 = vmul.f32 %v480, 1.442695
        %v482 = vpow.pop %v481
        %v483 = vadd.f32 %v482, 1.0
        %v484 = vrcp.pop %v483
        %v485 = vmul.f32 1.0, %v484
        %v486 = vsub.f32 1.0, %v485
        %v488 = vrot.slane %v485, 1
        %vm490 = vcmask 1040384
        %v491 = vsel %vm490, %v488, %v486
        %492 = vst [vmem:[%s173] sm:$0x3] %v491
        %s493 = sand.u32 %s75, 1
        %s494 = scalar_lea.sflag [#allocation4], %s493
        %s495 = sand.u32 %s75, 1
        %s496 = smul.addr %s495, 2
        %s497 = scalar_lea.vmem [#allocation7], %s496
        // Predicated region
        $region37: #{net_forward.1} parent=27 // pred_check
          %p498 = pneg %p85
        $region38: #{net_forward.1} parent=27 // pred_check_branch
          %500 = sbr.rel (%p498) target = $region40
        $region39: #{net_forward.1} parent=27 // pred_region
          %s502 = ssub.s32 32, 32
          %503 = vsyncadd %s494, %s502
          %s504 = smul.addr %s20, 32
          %s505 = scalar_lea.hbm %s2, %s504
          %s507 = sshll.u32 %s497, 4
          %s508 = int_to_ptr.vmem [resolvable:$true] %s507
          %510 = dma.vmem_to_hbm [thread:$0]  %s508, 32, %s505, %s494
        $region40: #{net_forward.1} parent=27 // pred_fallthru
          _
      $region28: #{net_forward.1} parent=5 // pred_fallthru
        _
      %p511 = scmp.le.s32.totalorder 2, %s15
      // Predicated region
      $region41: #{net_forward.1} parent=5 // pred_check
        %p512 = pneg %p511
      $region42: #{net_forward.1} parent=5 // pred_check_branch
        %514 = sbr.rel (%p512) target = $region44
      $region43: #{net_forward.1} parent=5 // pred_region
        %s515 = ssub.s32 %s15, 2
        // Predicated region
        $region45: #{net_forward.1} parent=43 // pred_check
          %p516 = pneg %p91
        $region46: #{net_forward.1} parent=43 // pred_check_branch
          %518 = sbr.rel (%p516) target = $region48
        $region47: #{net_forward.1} parent=43 // pred_region
          %s519 = sand.u32 %s76, 1
          %s520 = scalar_lea.sflag [#allocation4], %s519
          %s521 = sand.u32 %s76, 1
          %s522 = smul.addr %s521, 2
          %s523 = scalar_lea.vmem [#allocation7], %s522
          %524 = dma.done %s520, 32
        $region48: #{net_forward.1} parent=43 // pred_fallthru
          _
      $region44: #{net_forward.1} parent=5 // pred_fallthru
        _
    $region6: #{net_forward.1} parent=1 // loop_footer
      %s19 = sadd.s32 1, %s15
    $region7: #{net_forward.1} parent=1 // loop_footer_branch
      %14 = sbr.rel target = $region3
    $region8: #{net_forward.1} parent=1 // loop_exit
      _
    %525 = vsyncpa [#allocation3], 1
    %s526 = scalar_lea.sflag [#allocation3], 1
    %527 = vsyncpa %s526, 1
    %528 = vsyncpa [#allocation6], 1
    %529 = vsyncpa [#allocation4], 1
    %s530 = scalar_lea.sflag [#allocation4], 1
    %531 = vsyncpa %s530, 1

</llo_original>
